<compile_context>
chip_gen: v5e
topology: v5e:2x2
jax: 0.10.0
libtpu: 0.0.40
codegen_flags: <defaults>
</compile_context>

<pallas_src>
import numpy as np
import jax
import jax.numpy as jnp
from jax import lax
from jax.experimental import pallas as pl
from jax.experimental.pallas import tpu as pltpu

_HIGHEST = lax.Precision.HIGHEST  # used only by the pure-JAX reference


# ----------------------------------------------------------------------------
# DFT matrices (glue): ortho rfft (N -> M modes) and ortho irfft (M modes -> N)
# ----------------------------------------------------------------------------
def _dft_matrices(n, m):
    idx_n = np.arange(n)
    idx_m = np.arange(m)
    s = 1.0 / np.sqrt(n)
    ang_f = 2.0 * np.pi * np.outer(idx_n, idx_m) / n          # (n, m)
    f_r = np.cos(ang_f) * s
    f_i = -np.sin(ang_f) * s
    # irfft with only the first m (<= n//2+1) modes populated:
    # out[w] = sum_m c_m * Re(X[m] * exp(+2*pi*i*m*w/n)) / sqrt(n)
    c = np.where((idx_m == 0) | ((n % 2 == 0) & (idx_m == n // 2)), 1.0, 2.0)
    ang_g = 2.0 * np.pi * np.outer(idx_m, idx_n) / n           # (m, n)
    g_r = np.cos(ang_g) * s * c[:, None]
    g_i = np.sin(ang_g) * s * c[:, None]
    return (f_r.astype(np.float32), f_i.astype(np.float32),
            g_r.astype(np.float32), g_i.astype(np.float32))


# ----------------------------------------------------------------------------
# Pallas kernel: one batch element per grid step, matmul-only inner structure.
#   x_ref    : (1, Cin, H, W)        input block
#   fwc_ref  : (1, W, 2*M2)          per-batch conditioned forward DFT (W axis)
#   fhtc_ref : (1, 2*M1, H)          per-batch conditioned forward DFT^T (H axis)
#   wcw_ref  : (Cin, 2*M2, Cout*W)   combined mix∘iDFT weight, W path (constant)
#   wch_ref  : (Cin, Cout*H, 2*M1)   combined mix∘iDFT weight, H path (constant)
#   o_ref    : (1, Cout, H, W)
# ----------------------------------------------------------------------------
def _cond_factor_fno_kernel(x_ref, fwc_ref, fhtc_ref, wcw_ref, wch_ref, o_ref):
    _, cin, h, w = x_ref.shape
    cout = o_ref.shape[1]

    xb = x_ref[0]                       # (Cin, H, W)
    fwc = fwc_ref[0]                    # (W, 2*M2)
    fhtc = fhtc_ref[0]                  # (2*M1, H)

    acc_w = jnp.zeros((h, cout * w), jnp.float32)   # W-path result, rows = h, cols = (o, w)
    acc_h = jnp.zeros((cout * h, w), jnp.float32)   # H-path result, rows = (o, h), cols = w

    for i in range(cin):                # static unroll over input channels (MXU accumulate)
        xi = xb[i]                                                       # (H, W)
        # ---- W path (rfft along lanes): forward DFT (cond folded in), then mix∘iDFT
        zw = jnp.dot(xi, fwc, preferred_element_type=jnp.float32)        # (H, 2*M2)
        acc_w = acc_w + jnp.dot(zw, wcw_ref[i],
                                preferred_element_type=jnp.float32)      # (H, Cout*W)
        # ---- H path (rfft along sublanes, applied from the left; lanes stay = W)
        zh = jnp.dot(fhtc, xi, preferred_element_type=jnp.float32)       # (2*M1, W)
        acc_h = acc_h + jnp.dot(wch_ref[i], zh,
                                preferred_element_type=jnp.float32)      # (Cout*H, W)

    # Combine the two paths per output channel with static slices (no relayout/transpose).
    for o in range(cout):
        tile = acc_h[o * h:(o + 1) * h, :] + acc_w[:, o * w:(o + 1) * w]  # (H, W)
        o_ref[0, o] = tile.astype(o_ref.dtype)


# ----------------------------------------------------------------------------
# Parameter init (deterministic, matching the module's __init__ shapes)
# ----------------------------------------------------------------------------
def init_params(key, in_channels, out_channels, cond_channels, n_modes):
    m1, m2 = n_modes
    k1, k2, k3, k4 = jax.random.split(key, 4)
    s1 = 1.0 / (cond_channels + 4 * m1)
    s2 = 1.0 / (cond_channels + 4 * m2)
    fl1_w = s1 * jax.random.normal(k1, (cond_channels, 2 * m1), jnp.float32)
    fl2_w = s2 * jax.random.normal(k2, (cond_channels, 2 * m2), jnp.float32)
    fl1_b = jnp.zeros((1, 2 * m1), jnp.float32)
    fl2_b = jnp.zeros((1, 2 * m2), jnp.float32)
    # weight_k: complex (Cin, Cout, Mk); kaiming_normal_ on the real part, imag stays 0
    std1 = float(np.sqrt(2.0 / (out_channels * m1)))
    std2 = float(np.sqrt(2.0 / (out_channels * m2)))
    w1_r = std1 * jax.random.normal(k3, (in_channels, out_channels, m1), jnp.float32)
    w2_r = std2 * jax.random.normal(k4, (in_channels, out_channels, m2), jnp.float32)
    return dict(fl1_w=fl1_w, fl1_b=fl1_b, fl2_w=fl2_w, fl2_b=fl2_b,
                w1_r=w1_r, w1_i=jnp.zeros_like(w1_r),
                w2_r=w2_r, w2_i=jnp.zeros_like(w2_r))


# ----------------------------------------------------------------------------
# Wrapper: FreqLinear + conditioning fold + combined-weight packing (XLA glue),
# then pallas_call over the batch.
# ----------------------------------------------------------------------------
def cond_factor_fno_conv2d(x, emb, params, n_modes):
    B, Cin, H, W = x.shape
    m1, m2 = n_modes
    # The original module's broadcasting (emb vs truncated spectrum) requires this.
    assert m1 == m2, "n_mode_1 must equal n_mode_2 (as required by the PyTorch module)"
    assert m1 <= H // 2 + 1 and m2 <= W // 2 + 1
    Cout = params["w1_r"].shape[1]

    # FreqLinear hoisted out of the kernel: (B,Ccond)@(Ccond,2M) + bias.
    # torch.view_as_complex layout: h.reshape(B, M, 2) -> [..., 0]=real, [..., 1]=imag.
    h1 = emb @ params["fl1_w"] + params["fl1_b"]            # (B, 2*m1)  -> cond_emb1 (dim=-1 path)
    h2 = emb @ params["fl2_w"] + params["fl2_b"]            # (B, 2*m2)  -> cond_emb2 (dim=-2 path)
    e1 = h1.reshape(B, m1, 2)
    e2 = h2.reshape(B, m2, 2)
    e1r, e1i = e1[..., 0], e1[..., 1]                       # (B, m1)
    e2r, e2i = e2[..., 0], e2[..., 1]                       # (B, m2)

    fw_r, fw_i, gw_r, gw_i = [jnp.asarray(a) for a in _dft_matrices(W, m2)]
    fh_r, fh_i, gh_r, gh_i = [jnp.asarray(a) for a in _dft_matrices(H, m1)]

    # Per-batch forward DFT matrices with the complex conditioning folded in
    # (fused real/imag: columns [real-producing | imag-producing]).
    fwc = jnp.concatenate(
        [fw_r[None] * e1r[:, None, :] - fw_i[None] * e1i[:, None, :],
         fw_r[None] * e1i[:, None, :] + fw_i[None] * e1r[:, None, :]],
        axis=2)                                             # (B, W, 2*m2)
    fhtc = jnp.concatenate(
        [e2r[:, :, None] * fh_r.T[None] - e2i[:, :, None] * fh_i.T[None],
         e2i[:, :, None] * fh_r.T[None] + e2r[:, :, None] * fh_i.T[None]],
        axis=1)                                             # (B, 2*m1, H)

    # Batch-independent combined (channel-mix ∘ inverse-DFT) weights.
    w1r, w1i = params["w1_r"], params["w1_i"]               # (Cin, Cout, m1)
    w2r, w2i = params["w2_r"], params["w2_i"]               # (Cin, Cout, m2)
    # W path: out_w[h, o*W+w] = sum_{i,k} Zcat[i,h,k] * wcw[i,k,o*W+w]
    wcw_r = (jnp.einsum('iom,mw->imow', w2r, gw_r)
             - jnp.einsum('iom,mw->imow', w2i, gw_i))
    wcw_i = -(jnp.einsum('iom,mw->imow', w2i, gw_r)
              + jnp.einsum('iom,mw->imow', w2r, gw_i))
    wcw = jnp.concatenate([wcw_r, wcw_i], axis=1).reshape(Cin, 2 * m2, Cout * W)
    # H path: out_h[o*H+h, w] = sum_{i,k} wch[i,o*H+h,k] * ZHcat[i,k,w]
    wch_r = (jnp.einsum('iom,mh->iohm', w1r, gh_r)
             - jnp.einsum('iom,mh->iohm', w1i, gh_i))
    wch_i = -(jnp.einsum('iom,mh->iohm', w1i, gh_r)
              + jnp.einsum('iom,mh->iohm', w1r, gh_i))
    wch = jnp.concatenate([wch_r, wch_i], axis=3).reshape(Cin, Cout * H, 2 * m1)

    grid_spec = pltpu.PrefetchScalarGridSpec(
        num_scalar_prefetch=0,
        grid=(B,),
        in_specs=[
            pl.BlockSpec((1, Cin, H, W), lambda b: (b, 0, 0, 0)),
            pl.BlockSpec((1, W, 2 * m2), lambda b: (b, 0, 0)),
            pl.BlockSpec((1, 2 * m1, H), lambda b: (b, 0, 0)),
            pl.BlockSpec((Cin, 2 * m2, Cout * W), lambda b: (0, 0, 0)),
            pl.BlockSpec((Cin, Cout * H, 2 * m1), lambda b: (0, 0, 0)),
        ],
        out_specs=pl.BlockSpec((1, Cout, H, W), lambda b: (b, 0, 0, 0)),
    )

    return pl.pallas_call(
        _cond_factor_fno_kernel,
        out_shape=jax.ShapeDtypeStruct((B, Cout, H, W), jnp.float32),
        grid_spec=grid_spec,
        compiler_params=pltpu.CompilerParams(
            dimension_semantics=("parallel",)),   # shards the batch across TCs (v7x megacore)
    )(x, fwc, fhtc, wcw, wch)


# ----------------------------------------------------------------------------
# Pure-JAX reference (mirrors the PyTorch forward) for correctness checking
# ----------------------------------------------------------------------------
def reference_forward(x, emb, params, n_modes):
    m1, m2 = n_modes
    B, Cin, H, W = x.shape
    Cout = params["w1_r"].shape[1]

    def freq_linear(w, b, mode):
        h = jnp.einsum("tc,cm->tm", emb, w, precision=_HIGHEST) + b
        h = h.reshape(B, mode, 2)
        return h[..., 0] + 1j * h[..., 1]

    e1 = freq_linear(params["fl1_w"], params["fl1_b"], m1)
    e2 = freq_linear(params["fl2_w"], params["fl2_b"], m2)
    w1 = params["w1_r"] + 1j * params["w1_i"]
    w2 = params["w2_r"] + 1j * params["w2_i"]

    # dim=-1 path (cond_emb1, weight_2)
    x_ft = jnp.fft.rfft(x, axis=-1, norm="ortho")
    mixed = jnp.einsum("bixy,ioy->boxy", x_ft[..., :m2] * e1[:, None, None, :], w2,
                       precision=_HIGHEST)
    out_ft = jnp.zeros((B, Cout, H, x_ft.shape[-1]), jnp.complex64).at[..., :m2].set(mixed)
    xx = jnp.fft.irfft(out_ft, n=W, axis=-1, norm="ortho")

    # dim=-2 path (cond_emb2, weight_1)
    x_ft2 = jnp.fft.rfft(x, axis=-2, norm="ortho")
    mixed2 = jnp.einsum("bixy,iox->boxy", x_ft2[..., :m1, :] * e2[:, None, :, None], w1,
                        precision=_HIGHEST)
    out_ft2 = jnp.zeros((B, Cout, x_ft2.shape[-2], W), jnp.complex64).at[..., :m1, :].set(mixed2)
    xy = jnp.fft.irfft(out_ft2, n=H, axis=-2, norm="ortho")
    return xx + xy


if __name__ == "__main__":
    B, Cin, Cout, Ccond = 2, 4, 4, 3
    H = W = 16
    n_modes = (5, 5)

    key = jax.random.PRNGKey(0)
    kx, ke, kp = jax.random.split(key, 3)
    x = jax.random.normal(kx, (B, Cin, H, W), jnp.float32)
    emb = jax.random.normal(ke, (B, Ccond), jnp.float32)
    params = init_params(kp, Cin, Cout, Ccond, n_modes)

    out = cond_factor_fno_conv2d(x, emb, params, n_modes)
    out = jax.block_until_ready(out)

    ref = reference_forward(x, emb, params, n_modes)
    # Tolerance accounts for DEFAULT (single-pass bf16) MXU precision in the kernel
    # (the previous version used HIGHEST, which the perf review asked to drop).
    np.testing.assert_allclose(np.asarray(out), np.asarray(ref), rtol=2e-2, atol=1e-2)

    print("KERNEL_OK")
</pallas_src>

<mosaic_0001>
module attributes {stable_mosaic.version = 11 : i64} {
  func.func @_cond_factor_fno_kernel(%arg0: i32, %arg1: memref<1x4x16x16xf32, #tpu.memory_space<vmem>>, %arg2: memref<1x16x10xf32, #tpu.memory_space<vmem>>, %arg3: memref<1x10x16xf32, #tpu.memory_space<vmem>>, %arg4: memref<4x10x64xf32, #tpu.memory_space<vmem>>, %arg5: memref<4x64x10xf32, #tpu.memory_space<vmem>>, %arg6: memref<1x4x16x16xf32, #tpu.memory_space<vmem>>) attributes {dimension_semantics = [#tpu.dimension_semantics<parallel>], iteration_bounds = array<i64: 2>, scalar_prefetch = 0 : i64, scratch_operands = 0 : i64, tpu.core_type = #tpu.core_type<tc>, window_params = [{transform_indices = @transform_0, window_bounds = array<i64: 1, 4, 16, 16>}, {transform_indices = @transform_1, window_bounds = array<i64: 1, 16, 10>}, {transform_indices = @transform_2, window_bounds = array<i64: 1, 10, 16>}, {pipeline_mode = #tpu.pipeline_mode<synchronous>, transform_indices = @transform_3, window_bounds = array<i64: 4, 10, 64>}, {pipeline_mode = #tpu.pipeline_mode<synchronous>, transform_indices = @transform_4, window_bounds = array<i64: 4, 64, 10>}, {transform_indices = @transform_5, window_bounds = array<i64: 1, 4, 16, 16>}]} {
    %c0 = arith.constant 0 : index
    %c0_0 = arith.constant 0 : index
    %c0_1 = arith.constant 0 : index
    %c0_2 = arith.constant 0 : index
    %0 = vector.load %arg1[%c0, %c0_0, %c0_1, %c0_2] : memref<1x4x16x16xf32, #tpu.memory_space<vmem>>, vector<1x4x16x16xf32>
    %1 = vector.shape_cast %0 : vector<1x4x16x16xf32> to vector<4x16x16xf32>
    %c0_3 = arith.constant 0 : index
    %c0_4 = arith.constant 0 : index
    %c0_5 = arith.constant 0 : index
    %2 = vector.load %arg2[%c0_3, %c0_4, %c0_5] : memref<1x16x10xf32, #tpu.memory_space<vmem>>, vector<1x16x10xf32>
    %3 = vector.shape_cast %2 : vector<1x16x10xf32> to vector<16x10xf32>
    %c0_6 = arith.constant 0 : index
    %c0_7 = arith.constant 0 : index
    %c0_8 = arith.constant 0 : index
    %4 = vector.load %arg3[%c0_6, %c0_7, %c0_8] : memref<1x10x16xf32, #tpu.memory_space<vmem>>, vector<1x10x16xf32>
    %5 = vector.shape_cast %4 : vector<1x10x16xf32> to vector<10x16xf32>
    %cst = arith.constant 0.000000e+00 : f32
    %6 = vector.broadcast %cst : f32 to vector<16x64xf32>
    %cst_9 = arith.constant 0.000000e+00 : f32
    %7 = vector.broadcast %cst_9 : f32 to vector<64x16xf32>
    %8 = vector.extract_strided_slice %1 {offsets = [0, 0, 0], sizes = [1, 16, 16], strides = [1, 1, 1]} : vector<4x16x16xf32> to vector<1x16x16xf32>
    %9 = vector.shape_cast %8 : vector<1x16x16xf32> to vector<16x16xf32>
    %cst_10 = arith.constant dense<0.000000e+00> : vector<16x10xf32>
    %10 = tpu.matmul %9, %3, %cst_10 {dimension_numbers = #tpu.dot_dimension_numbers<[1], [0], [0], [1], [0, 0, 1, 1], [], []>} : vector<16x16xf32>, vector<16x10xf32>, vector<16x10xf32> -> vector<16x10xf32>
    %c0_11 = arith.constant 0 : index
    %c0_12 = arith.constant 0 : index
    %c0_13 = arith.constant 0 : index
    %11 = vector.load %arg4[%c0_11, %c0_12, %c0_13] : memref<4x10x64xf32, #tpu.memory_space<vmem>>, vector<1x10x64xf32>
    %12 = vector.shape_cast %11 : vector<1x10x64xf32> to vector<10x64xf32>
    %cst_14 = arith.constant dense<0.000000e+00> : vector<16x64xf32>
    %13 = tpu.matmul %10, %12, %cst_14 {dimension_numbers = #tpu.dot_dimension_numbers<[1], [0], [0], [1], [0, 0, 1, 1], [], []>} : vector<16x10xf32>, vector<10x64xf32>, vector<16x64xf32> -> vector<16x64xf32>
    %14 = arith.addf %6, %13 : vector<16x64xf32>
    %cst_15 = arith.constant dense<0.000000e+00> : vector<10x16xf32>
    %15 = tpu.matmul %5, %9, %cst_15 {dimension_numbers = #tpu.dot_dimension_numbers<[1], [0], [0], [1], [0, 0, 1, 1], [], []>} : vector<10x16xf32>, vector<16x16xf32>, vector<10x16xf32> -> vector<10x16xf32>
    %c0_16 = arith.constant 0 : index
    %c0_17 = arith.constant 0 : index
    %c0_18 = arith.constant 0 : index
    %16 = vector.load %arg5[%c0_16, %c0_17, %c0_18] : memref<4x64x10xf32, #tpu.memory_space<vmem>>, vector<1x64x10xf32>
    %17 = vector.shape_cast %16 : vector<1x64x10xf32> to vector<64x10xf32>
    %cst_19 = arith.constant dense<0.000000e+00> : vector<64x16xf32>
    %18 = tpu.matmul %17, %15, %cst_19 {dimension_numbers = #tpu.dot_dimension_numbers<[1], [0], [0], [1], [0, 0, 1, 1], [], []>} : vector<64x10xf32>, vector<10x16xf32>, vector<64x16xf32> -> vector<64x16xf32>
    %19 = arith.addf %7, %18 : vector<64x16xf32>
    %20 = vector.extract_strided_slice %1 {offsets = [1, 0, 0], sizes = [1, 16, 16], strides = [1, 1, 1]} : vector<4x16x16xf32> to vector<1x16x16xf32>
    %21 = vector.shape_cast %20 : vector<1x16x16xf32> to vector<16x16xf32>
    %cst_20 = arith.constant dense<0.000000e+00> : vector<16x10xf32>
    %22 = tpu.matmul %21, %3, %cst_20 {dimension_numbers = #tpu.dot_dimension_numbers<[1], [0], [0], [1], [0, 0, 1, 1], [], []>} : vector<16x16xf32>, vector<16x10xf32>, vector<16x10xf32> -> vector<16x10xf32>
    %c1 = arith.constant 1 : index
    %c0_21 = arith.constant 0 : index
    %c0_22 = arith.constant 0 : index
    %23 = vector.load %arg4[%c1, %c0_21, %c0_22] : memref<4x10x64xf32, #tpu.memory_space<vmem>>, vector<1x10x64xf32>
    %24 = vector.shape_cast %23 : vector<1x10x64xf32> to vector<10x64xf32>
    %cst_23 = arith.constant dense<0.000000e+00> : vector<16x64xf32>
    %25 = tpu.matmul %22, %24, %cst_23 {dimension_numbers = #tpu.dot_dimension_numbers<[1], [0], [0], [1], [0, 0, 1, 1], [], []>} : vector<16x10xf32>, vector<10x64xf32>, vector<16x64xf32> -> vector<16x64xf32>
    %26 = arith.addf %14, %25 : vector<16x64xf32>
    %cst_24 = arith.constant dense<0.000000e+00> : vector<10x16xf32>
    %27 = tpu.matmul %5, %21, %cst_24 {dimension_numbers = #tpu.dot_dimension_numbers<[1], [0], [0], [1], [0, 0, 1, 1], [], []>} : vector<10x16xf32>, vector<16x16xf32>, vector<10x16xf32> -> vector<10x16xf32>
    %c1_25 = arith.constant 1 : index
    %c0_26 = arith.constant 0 : index
    %c0_27 = arith.constant 0 : index
    %28 = vector.load %arg5[%c1_25, %c0_26, %c0_27] : memref<4x64x10xf32, #tpu.memory_space<vmem>>, vector<1x64x10xf32>
    %29 = vector.shape_cast %28 : vector<1x64x10xf32> to vector<64x10xf32>
    %cst_28 = arith.constant dense<0.000000e+00> : vector<64x16xf32>
    %30 = tpu.matmul %29, %27, %cst_28 {dimension_numbers = #tpu.dot_dimension_numbers<[1], [0], [0], [1], [0, 0, 1, 1], [], []>} : vector<64x10xf32>, vector<10x16xf32>, vector<64x16xf32> -> vector<64x16xf32>
    %31 = arith.addf %19, %30 : vector<64x16xf32>
    %32 = vector.extract_strided_slice %1 {offsets = [2, 0, 0], sizes = [1, 16, 16], strides = [1, 1, 1]} : vector<4x16x16xf32> to vector<1x16x16xf32>
    %33 = vector.shape_cast %32 : vector<1x16x16xf32> to vector<16x16xf32>
    %cst_29 = arith.constant dense<0.000000e+00> : vector<16x10xf32>
    %34 = tpu.matmul %33, %3, %cst_29 {dimension_numbers = #tpu.dot_dimension_numbers<[1], [0], [0], [1], [0, 0, 1, 1], [], []>} : vector<16x16xf32>, vector<16x10xf32>, vector<16x10xf32> -> vector<16x10xf32>
    %c2 = arith.constant 2 : index
    %c0_30 = arith.constant 0 : index
    %c0_31 = arith.constant 0 : index
    %35 = vector.load %arg4[%c2, %c0_30, %c0_31] : memref<4x10x64xf32, #tpu.memory_space<vmem>>, vector<1x10x64xf32>
    %36 = vector.shape_cast %35 : vector<1x10x64xf32> to vector<10x64xf32>
    %cst_32 = arith.constant dense<0.000000e+00> : vector<16x64xf32>
    %37 = tpu.matmul %34, %36, %cst_32 {dimension_numbers = #tpu.dot_dimension_numbers<[1], [0], [0], [1], [0, 0, 1, 1], [], []>} : vector<16x10xf32>, vector<10x64xf32>, vector<16x64xf32> -> vector<16x64xf32>
    %38 = arith.addf %26, %37 : vector<16x64xf32>
    %cst_33 = arith.constant dense<0.000000e+00> : vector<10x16xf32>
    %39 = tpu.matmul %5, %33, %cst_33 {dimension_numbers = #tpu.dot_dimension_numbers<[1], [0], [0], [1], [0, 0, 1, 1], [], []>} : vector<10x16xf32>, vector<16x16xf32>, vector<10x16xf32> -> vector<10x16xf32>
    %c2_34 = arith.constant 2 : index
    %c0_35 = arith.constant 0 : index
    %c0_36 = arith.constant 0 : index
    %40 = vector.load %arg5[%c2_34, %c0_35, %c0_36] : memref<4x64x10xf32, #tpu.memory_space<vmem>>, vector<1x64x10xf32>
    %41 = vector.shape_cast %40 : vector<1x64x10xf32> to vector<64x10xf32>
    %cst_37 = arith.constant dense<0.000000e+00> : vector<64x16xf32>
    %42 = tpu.matmul %41, %39, %cst_37 {dimension_numbers = #tpu.dot_dimension_numbers<[1], [0], [0], [1], [0, 0, 1, 1], [], []>} : vector<64x10xf32>, vector<10x16xf32>, vector<64x16xf32> -> vector<64x16xf32>
    %43 = arith.addf %31, %42 : vector<64x16xf32>
    %44 = vector.extract_strided_slice %1 {offsets = [3, 0, 0], sizes = [1, 16, 16], strides = [1, 1, 1]} : vector<4x16x16xf32> to vector<1x16x16xf32>
    %45 = vector.shape_cast %44 : vector<1x16x16xf32> to vector<16x16xf32>
    %cst_38 = arith.constant dense<0.000000e+00> : vector<16x10xf32>
    %46 = tpu.matmul %45, %3, %cst_38 {dimension_numbers = #tpu.dot_dimension_numbers<[1], [0], [0], [1], [0, 0, 1, 1], [], []>} : vector<16x16xf32>, vector<16x10xf32>, vector<16x10xf32> -> vector<16x10xf32>
    %c3 = arith.constant 3 : index
    %c0_39 = arith.constant 0 : index
    %c0_40 = arith.constant 0 : index
    %47 = vector.load %arg4[%c3, %c0_39, %c0_40] : memref<4x10x64xf32, #tpu.memory_space<vmem>>, vector<1x10x64xf32>
    %48 = vector.shape_cast %47 : vector<1x10x64xf32> to vector<10x64xf32>
    %cst_41 = arith.constant dense<0.000000e+00> : vector<16x64xf32>
    %49 = tpu.matmul %46, %48, %cst_41 {dimension_numbers = #tpu.dot_dimension_numbers<[1], [0], [0], [1], [0, 0, 1, 1], [], []>} : vector<16x10xf32>, vector<10x64xf32>, vector<16x64xf32> -> vector<16x64xf32>
    %50 = arith.addf %38, %49 : vector<16x64xf32>
    %cst_42 = arith.constant dense<0.000000e+00> : vector<10x16xf32>
    %51 = tpu.matmul %5, %45, %cst_42 {dimension_numbers = #tpu.dot_dimension_numbers<[1], [0], [0], [1], [0, 0, 1, 1], [], []>} : vector<10x16xf32>, vector<16x16xf32>, vector<10x16xf32> -> vector<10x16xf32>
    %c3_43 = arith.constant 3 : index
    %c0_44 = arith.constant 0 : index
    %c0_45 = arith.constant 0 : index
    %52 = vector.load %arg5[%c3_43, %c0_44, %c0_45] : memref<4x64x10xf32, #tpu.memory_space<vmem>>, vector<1x64x10xf32>
    %53 = vector.shape_cast %52 : vector<1x64x10xf32> to vector<64x10xf32>
    %cst_46 = arith.constant dense<0.000000e+00> : vector<64x16xf32>
    %54 = tpu.matmul %53, %51, %cst_46 {dimension_numbers = #tpu.dot_dimension_numbers<[1], [0], [0], [1], [0, 0, 1, 1], [], []>} : vector<64x10xf32>, vector<10x16xf32>, vector<64x16xf32> -> vector<64x16xf32>
    %55 = arith.addf %43, %54 : vector<64x16xf32>
    %56 = vector.extract_strided_slice %55 {offsets = [0, 0], sizes = [16, 16], strides = [1, 1]} : vector<64x16xf32> to vector<16x16xf32>
    %57 = vector.extract_strided_slice %50 {offsets = [0, 0], sizes = [16, 16], strides = [1, 1]} : vector<16x64xf32> to vector<16x16xf32>
    %58 = arith.addf %56, %57 : vector<16x16xf32>
    %c0_47 = arith.constant 0 : index
    %c0_48 = arith.constant 0 : index
    %c0_49 = arith.constant 0 : index
    %c0_50 = arith.constant 0 : index
    %59 = vector.load %arg6[%c0_47, %c0_48, %c0_49, %c0_50] : memref<1x4x16x16xf32, #tpu.memory_space<vmem>>, vector<1x1x16x16xf32>
    %60 = vector.shape_cast %59 : vector<1x1x16x16xf32> to vector<16x16xf32>
    %61 = vector.shape_cast %58 : vector<16x16xf32> to vector<1x1x16x16xf32>
    tpu.vector_store %arg6[%c0_47, %c0_48, %c0_49, %c0_50], %61 {strides = array<i32>} : memref<1x4x16x16xf32, #tpu.memory_space<vmem>>, vector<1x1x16x16xf32>,
    %62 = vector.extract_strided_slice %55 {offsets = [16, 0], sizes = [16, 16], strides = [1, 1]} : vector<64x16xf32> to vector<16x16xf32>
    %63 = vector.extract_strided_slice %50 {offsets = [0, 16], sizes = [16, 16], strides = [1, 1]} : vector<16x64xf32> to vector<16x16xf32>
    %64 = arith.addf %62, %63 : vector<16x16xf32>
    %c0_51 = arith.constant 0 : index
    %c1_52 = arith.constant 1 : index
    %c0_53 = arith.constant 0 : index
    %c0_54 = arith.constant 0 : index
    %65 = vector.load %arg6[%c0_51, %c1_52, %c0_53, %c0_54] : memref<1x4x16x16xf32, #tpu.memory_space<vmem>>, vector<1x1x16x16xf32>
    %66 = vector.shape_cast %65 : vector<1x1x16x16xf32> to vector<16x16xf32>
    %67 = vector.shape_cast %64 : vector<16x16xf32> to vector<1x1x16x16xf32>
    tpu.vector_store %arg6[%c0_51, %c1_52, %c0_53, %c0_54], %67 {strides = array<i32>} : memref<1x4x16x16xf32, #tpu.memory_space<vmem>>, vector<1x1x16x16xf32>,
    %68 = vector.extract_strided_slice %55 {offsets = [32, 0], sizes = [16, 16], strides = [1, 1]} : vector<64x16xf32> to vector<16x16xf32>
    %69 = vector.extract_strided_slice %50 {offsets = [0, 32], sizes = [16, 16], strides = [1, 1]} : vector<16x64xf32> to vector<16x16xf32>
    %70 = arith.addf %68, %69 : vector<16x16xf32>
    %c0_55 = arith.constant 0 : index
    %c2_56 = arith.constant 2 : index
    %c0_57 = arith.constant 0 : index
    %c0_58 = arith.constant 0 : index
    %71 = vector.load %arg6[%c0_55, %c2_56, %c0_57, %c0_58] : memref<1x4x16x16xf32, #tpu.memory_space<vmem>>, vector<1x1x16x16xf32>
    %72 = vector.shape_cast %71 : vector<1x1x16x16xf32> to vector<16x16xf32>
    %73 = vector.shape_cast %70 : vector<16x16xf32> to vector<1x1x16x16xf32>
    tpu.vector_store %arg6[%c0_55, %c2_56, %c0_57, %c0_58], %73 {strides = array<i32>} : memref<1x4x16x16xf32, #tpu.memory_space<vmem>>, vector<1x1x16x16xf32>,
    %74 = vector.extract_strided_slice %55 {offsets = [48, 0], sizes = [16, 16], strides = [1, 1]} : vector<64x16xf32> to vector<16x16xf32>
    %75 = vector.extract_strided_slice %50 {offsets = [0, 48], sizes = [16, 16], strides = [1, 1]} : vector<16x64xf32> to vector<16x16xf32>
    %76 = arith.addf %74, %75 : vector<16x16xf32>
    %c0_59 = arith.constant 0 : index
    %c3_60 = arith.constant 3 : index
    %c0_61 = arith.constant 0 : index
    %c0_62 = arith.constant 0 : index
    %77 = vector.load %arg6[%c0_59, %c3_60, %c0_61, %c0_62] : memref<1x4x16x16xf32, #tpu.memory_space<vmem>>, vector<1x1x16x16xf32>
    %78 = vector.shape_cast %77 : vector<1x1x16x16xf32> to vector<16x16xf32>
    %79 = vector.shape_cast %76 : vector<16x16xf32> to vector<1x1x16x16xf32>
    tpu.vector_store %arg6[%c0_59, %c3_60, %c0_61, %c0_62], %79 {strides = array<i32>} : memref<1x4x16x16xf32, #tpu.memory_space<vmem>>, vector<1x1x16x16xf32>,
    return
  }
  func.func @transform_0(%arg0: i32) -> (i32, i32, i32, i32) {
    %c0_i32 = arith.constant 0 : i32
    %c0_i32_0 = arith.constant 0 : i32
    %c0_i32_1 = arith.constant 0 : i32
    %c0_i32_2 = arith.constant 0 : i32
    return %arg0, %c0_i32, %c0_i32_0, %c0_i32_1 : i32, i32, i32, i32
  }
  func.func @transform_1(%arg0: i32) -> (i32, i32, i32) {
    %c0_i32 = arith.constant 0 : i32
    %c0_i32_0 = arith.constant 0 : i32
    %c0_i32_1 = arith.constant 0 : i32
    return %arg0, %c0_i32, %c0_i32_0 : i32, i32, i32
  }
  func.func @transform_2(%arg0: i32) -> (i32, i32, i32) {
    %c0_i32 = arith.constant 0 : i32
    %c0_i32_0 = arith.constant 0 : i32
    %c0_i32_1 = arith.constant 0 : i32
    return %arg0, %c0_i32, %c0_i32_0 : i32, i32, i32
  }
  func.func @transform_3(%arg0: i32) -> (i32, i32, i32) {
    %c0_i32 = arith.constant 0 : i32
    %c0_i32_0 = arith.constant 0 : i32
    %c0_i32_1 = arith.constant 0 : i32
    %c0_i32_2 = arith.constant 0 : i32
    return %c0_i32, %c0_i32_0, %c0_i32_1 : i32, i32, i32
  }
  func.func @transform_4(%arg0: i32) -> (i32, i32, i32) {
    %c0_i32 = arith.constant 0 : i32
    %c0_i32_0 = arith.constant 0 : i32
    %c0_i32_1 = arith.constant 0 : i32
    %c0_i32_2 = arith.constant 0 : i32
    return %c0_i32, %c0_i32_0, %c0_i32_1 : i32, i32, i32
  }
  func.func @transform_5(%arg0: i32) -> (i32, i32, i32, i32) {
    %c0_i32 = arith.constant 0 : i32
    %c0_i32_0 = arith.constant 0 : i32
    %c0_i32_1 = arith.constant 0 : i32
    %c0_i32_2 = arith.constant 0 : i32
    return %arg0, %c0_i32, %c0_i32_0, %c0_i32_1 : i32, i32, i32, i32
  }
}

</mosaic_0001>

<llo_original>
// kernel: tpu_custom_call.1
$region0: #{tpu_custom_call.1}
  #allocation0 [shape = 'u32[]', space=smem, size = 0x4, offset = 0x4, fixed_abs, tag = 'smem constant byte address 0x4 - core index']
  #allocation1 [shape = 'u32[72,128]{1,0:T(1,128)}', space=vmem, size = 0x9000, scoped, tag = 'internal scratch']
  %s0 = inlined_call_operand.vmem [shape: f32[2,4,16,16], index: 0, kind: input, shape index: {}]
  %s1 = inlined_call_operand.vmem [shape: f32[2,16,10], index: 1, kind: input, shape index: {}]
  %s2 = inlined_call_operand.vmem [shape: f32[2,10,16], index: 2, kind: input, shape index: {}]
  %s3 = inlined_call_operand.vmem [shape: f32[4,10,64], index: 3, kind: input, shape index: {}]
  %s4 = inlined_call_operand.vmem [shape: f32[4,64,10], index: 4, kind: input, shape index: {}]
  %s5 = inlined_call_operand.hbm [shape: f32[2,4,16,16], index: 5, kind: output, shape index: {}]
  %s6 = sld [smem:[#allocation0]]
  $region53: #{tpu_custom_call.1} parent=0
    _
  %s8 = ssub.s32 1, %s6
  %s9 = scalar_select 0, %s8, %s6
  $region1: #{tpu_custom_call.1} parent=0
    #allocation2 [shape = 'u8[65536]{0}', space=vmem, size = 0x10000, scoped, tag = 'output window, operand 0']
    #allocation3 [shape = 's32[2]{0}', space=sflag, size = 0x8, scoped, tag = 'scoped memory for tpu_custom_call.1']
    %10 = vsyncpa [#allocation3], 0
    %s11 = scalar_lea.sflag [#allocation3], 1
    %12 = vsyncpa %s11, 0
    loop: start=0, step=1, limit=4
    $region2: #{tpu_custom_call.1} parent=1 // loop_pre_header
      _
    $region3: #{tpu_custom_call.1} parent=1 // loop_header
      %s14 = sphi 0, %s18
      %p15 = scmp.ge.s32.totalorder %s14, 4
      %s24 = sphi 0, %s26
      %s27 = sphi 0, %s24
      %s28 = sphi 0, %s27
      %s44 = sphi 0, %s28
      %s50 = sphi 0, %s52
      %s53 = sphi 0, %s50
      %s54 = sphi 0, %s53
      %s70 = sphi 0, %s54
      %s76 = sphi 0, %s78
      %s79 = sphi 0, %s76
      %s80 = sphi 0, %s79
      %s96 = sphi 0, %s80
      %s100 = sphi 0, %s100
      %s102 = sphi 0, %s100
      %s103 = sphi 0, %s102
      %s117 = sphi 0, %s103
      %s121 = sphi 0, %s121
      %s123 = sphi 0, %s121
      %s124 = sphi 0, %s123
      %s138 = sphi 0, %s124
      %s144 = sphi 0, %s146
      %s147 = sphi 0, %s144
      %s148 = sphi 0, %s147
      %s164 = sphi 0, %s148
    $region4: #{tpu_custom_call.1} parent=1 // loop_header_branch
      %17 = sbr.rel (%p15) target = $region8
    $region5: #{tpu_custom_call.1} parent=1 // loop_body
      %s19 = ssub.s32 %s14, 1
      %s20 = ssub.s32 %s14, 2
      %s21 = sadd.s32 %s14, 1
      %s22 = ssub.s32 %s14, %s21
      %p23 = scmp.eq.s32.totalorder %s22, 0
      %s25 = sadd.s32 %s24, 1
      %s26 = scalar_select %p23, %s24, %s25
      %p29 = pneg %p23
      %p30 = scmp.eq.s32.totalorder %s14, 1
      %p31 = por %p29, %p30
      %p32 = scmp.ne.s32.totalorder %s24, %s27
      %p33 = scmp.eq.s32.totalorder %s14, 0
      %p34 = por %p32, %p33
      %p35 = scmp.ne.s32.totalorder %s24, %s27
      %p36 = scmp.eq.s32.totalorder %s19, 1
      %p37 = por %p35, %p36
      %p38 = scmp.ne.s32.totalorder %s27, %s28
      %p39 = scmp.eq.s32.totalorder %s19, 0
      %p40 = por %p38, %p39
      %p41 = scmp.ne.s32.totalorder %s27, %s28
      %p42 = scmp.eq.s32.totalorder %s20, 1
      %p43 = por %p41, %p42
      %p45 = scmp.ne.s32.totalorder %s28, %s44
      %p46 = scmp.eq.s32.totalorder %s20, 0
      %p47 = por %p45, %p46
      %s48 = ssub.s32 %s14, %s21
      %p49 = scmp.eq.s32.totalorder %s48, 0
      %s51 = sadd.s32 %s50, 1
      %s52 = scalar_select %p49, %s50, %s51
      %p55 = pneg %p49
      %p56 = scmp.eq.s32.totalorder %s14, 1
      %p57 = por %p55, %p56
      %p58 = scmp.ne.s32.totalorder %s50, %s53
      %p59 = scmp.eq.s32.totalorder %s14, 0
      %p60 = por %p58, %p59
      %p61 = scmp.ne.s32.totalorder %s50, %s53
      %p62 = scmp.eq.s32.totalorder %s19, 1
      %p63 = por %p61, %p62
      %p64 = scmp.ne.s32.totalorder %s53, %s54
      %p65 = scmp.eq.s32.totalorder %s19, 0
      %p66 = por %p64, %p65
      %p67 = scmp.ne.s32.totalorder %s53, %s54
      %p68 = scmp.eq.s32.totalorder %s20, 1
      %p69 = por %p67, %p68
      %p71 = scmp.ne.s32.totalorder %s54, %s70
      %p72 = scmp.eq.s32.totalorder %s20, 0
      %p73 = por %p71, %p72
      %s74 = ssub.s32 %s14, %s21
      %p75 = scmp.eq.s32.totalorder %s74, 0
      %s77 = sadd.s32 %s76, 1
      %s78 = scalar_select %p75, %s76, %s77
      %p81 = pneg %p75
      %p82 = scmp.eq.s32.totalorder %s14, 1
      %p83 = por %p81, %p82
      %p84 = scmp.ne.s32.totalorder %s76, %s79
      %p85 = scmp.eq.s32.totalorder %s14, 0
      %p86 = por %p84, %p85
      %p87 = scmp.ne.s32.totalorder %s76, %s79
      %p88 = scmp.eq.s32.totalorder %s19, 1
      %p89 = por %p87, %p88
      %p90 = scmp.ne.s32.totalorder %s79, %s80
      %p91 = scmp.eq.s32.totalorder %s19, 0
      %p92 = por %p90, %p91
      %p93 = scmp.ne.s32.totalorder %s79, %s80
      %p94 = scmp.eq.s32.totalorder %s20, 1
      %p95 = por %p93, %p94
      %p97 = scmp.ne.s32.totalorder %s80, %s96
      %p98 = scmp.eq.s32.totalorder %s20, 0
      %p99 = por %p97, %p98
      %s101 = sadd.s32 %s100, 1
      %p104 = scmp.eq.s32.totalorder %s14, 1
      %p105 = scmp.ne.s32.totalorder %s100, %s102
      %p106 = scmp.eq.s32.totalorder %s14, 0
      %p107 = por %p105, %p106
      %p108 = scmp.ne.s32.totalorder %s100, %s102
      %p109 = scmp.eq.s32.totalorder %s19, 1
      %p110 = por %p108, %p109
      %p111 = scmp.ne.s32.totalorder %s102, %s103
      %p112 = scmp.eq.s32.totalorder %s19, 0
      %p113 = por %p111, %p112
      %p114 = scmp.ne.s32.totalorder %s102, %s103
      %p115 = scmp.eq.s32.totalorder %s20, 1
      %p116 = por %p114, %p115
      %p118 = scmp.ne.s32.totalorder %s103, %s117
      %p119 = scmp.eq.s32.totalorder %s20, 0
      %p120 = por %p118, %p119
      %s122 = sadd.s32 %s121, 1
      %p125 = scmp.eq.s32.totalorder %s14, 1
      %p126 = scmp.ne.s32.totalorder %s121, %s123
      %p127 = scmp.eq.s32.totalorder %s14, 0
      %p128 = por %p126, %p127
      %p129 = scmp.ne.s32.totalorder %s121, %s123
      %p130 = scmp.eq.s32.totalorder %s19, 1
      %p131 = por %p129, %p130
      %p132 = scmp.ne.s32.totalorder %s123, %s124
      %p133 = scmp.eq.s32.totalorder %s19, 0
      %p134 = por %p132, %p133
      %p135 = scmp.ne.s32.totalorder %s123, %s124
      %p136 = scmp.eq.s32.totalorder %s20, 1
      %p137 = por %p135, %p136
      %p139 = scmp.ne.s32.totalorder %s124, %s138
      %p140 = scmp.eq.s32.totalorder %s20, 0
      %p141 = por %p139, %p140
      %s142 = ssub.s32 %s14, %s21
      %p143 = scmp.eq.s32.totalorder %s142, 0
      %s145 = sadd.s32 %s144, 1
      %s146 = scalar_select %p143, %s144, %s145
      %p149 = pneg %p143
      %p150 = scmp.eq.s32.totalorder %s14, 1
      %p151 = por %p149, %p150
      %p152 = scmp.ne.s32.totalorder %s144, %s147
      %p153 = scmp.eq.s32.totalorder %s14, 0
      %p154 = por %p152, %p153
      %p155 = scmp.ne.s32.totalorder %s144, %s147
      %p156 = scmp.eq.s32.totalorder %s19, 1
      %p157 = por %p155, %p156
      %p158 = scmp.ne.s32.totalorder %s147, %s148
      %p159 = scmp.eq.s32.totalorder %s19, 0
      %p160 = por %p158, %p159
      %p161 = scmp.ne.s32.totalorder %s147, %s148
      %p162 = scmp.eq.s32.totalorder %s20, 1
      %p163 = por %p161, %p162
      %p165 = scmp.ne.s32.totalorder %s148, %s164
      %p166 = scmp.eq.s32.totalorder %s20, 0
      %p167 = por %p165, %p166
      %p168 = scmp.le.s32.totalorder 1, %s14
      %p169 = scmp.lt.s32.totalorder %s14, 3
      %p170 = pnand %p168, %p169
      %p171 = pneg %p170
      // Predicated region
      $region9: #{tpu_custom_call.1} parent=5 // pred_check
        _
      $region10: #{tpu_custom_call.1} parent=5 // pred_check_branch
        %173 = sbr.rel (%p170) target = $region12
      $region11: #{tpu_custom_call.1} parent=5 // pred_region
        %s174 = ssub.s32 %s14, 1
        // Predicated region
        $region13: #{tpu_custom_call.1} parent=11 // pred_check
          %p175 = pneg %p113
        $region14: #{tpu_custom_call.1} parent=11 // pred_check_branch
          %177 = sbr.rel (%p175) target = $region16
        $region15: #{tpu_custom_call.1} parent=11 // pred_region
          _
        $region16: #{tpu_custom_call.1} parent=11 // pred_fallthru
          _
        // Predicated region
        $region17: #{tpu_custom_call.1} parent=11 // pred_check
          %p178 = pneg %p134
        $region18: #{tpu_custom_call.1} parent=11 // pred_check_branch
          %180 = sbr.rel (%p178) target = $region20
        $region19: #{tpu_custom_call.1} parent=11 // pred_region
          _
        $region20: #{tpu_custom_call.1} parent=11 // pred_fallthru
          _
      $region12: #{tpu_custom_call.1} parent=5 // pred_fallthru
        _
      %p181 = scmp.lt.s32.totalorder %s14, 2
      // Predicated region
      $region21: #{tpu_custom_call.1} parent=5 // pred_check
        %p182 = pneg %p181
      $region22: #{tpu_custom_call.1} parent=5 // pred_check_branch
        %184 = sbr.rel (%p182) target = $region24
      $region23: #{tpu_custom_call.1} parent=5 // pred_region
        // Predicated region
        $region25: #{tpu_custom_call.1} parent=23 // pred_check
          %p185 = pneg %p34
        $region26: #{tpu_custom_call.1} parent=23 // pred_check_branch
          %187 = sbr.rel (%p185) target = $region28
        $region27: #{tpu_custom_call.1} parent=23 // pred_region
          %p188 = scmp.lt.s32.totalorder %s14, 1
          %s189 = scalar_select %p188, %s14, 1
          %s190 = smul.addr %s189, 8
          %s191 = smul.addr %s190, 8
          %s192 = scalar_lea.vmem %s0, %s191
        $region28: #{tpu_custom_call.1} parent=23 // pred_fallthru
          _
        // Predicated region
        $region29: #{tpu_custom_call.1} parent=23 // pred_check
          %p193 = pneg %p60
        $region30: #{tpu_custom_call.1} parent=23 // pred_check_branch
          %195 = sbr.rel (%p193) target = $region32
        $region31: #{tpu_custom_call.1} parent=23 // pred_region
          %p196 = scmp.lt.s32.totalorder %s14, 1
          %s197 = scalar_select %p196, %s14, 1
          %s198 = smul.addr %s197, 2
          %s199 = smul.addr %s198, 8
          %s200 = scalar_lea.vmem %s1, %s199
        $region32: #{tpu_custom_call.1} parent=23 // pred_fallthru
          _
        // Predicated region
        $region33: #{tpu_custom_call.1} parent=23 // pred_check
          %p201 = pneg %p86
        $region34: #{tpu_custom_call.1} parent=23 // pred_check_branch
          %203 = sbr.rel (%p201) target = $region36
        $region35: #{tpu_custom_call.1} parent=23 // pred_region
          %p204 = scmp.lt.s32.totalorder %s14, 1
          %s205 = scalar_select %p204, %s14, 1
          %s206 = smul.addr %s205, 2
          %s207 = smul.addr %s206, 8
          %s208 = scalar_lea.vmem %s2, %s207
        $region36: #{tpu_custom_call.1} parent=23 // pred_fallthru
          _
      $region24: #{tpu_custom_call.1} parent=5 // pred_fallthru
        _
      %p209 = scmp.le.s32.totalorder 1, %s14
      %p210 = scmp.lt.s32.totalorder %s14, 3
      %p211 = pnand %p209, %p210
      %p212 = pneg %p211
      // Predicated region
      $region37: #{tpu_custom_call.1} parent=5 // pred_check
        _
      $region38: #{tpu_custom_call.1} parent=5 // pred_check_branch
        %214 = sbr.rel (%p211) target = $region40
      $region39: #{tpu_custom_call.1} parent=5 // pred_region
        %s215 = ssub.s32 %s14, 1
        %p216 = scmp.lt.s32.totalorder %s19, 1
        %s217 = scalar_select %p216, %s19, 1
        %s218 = smul.addr %s217, 8
        %s219 = smul.addr %s218, 8
        %s220 = scalar_lea.vmem %s0, %s219
        %p221 = pneg %p40
        %p222 = pneg %p37
        %p223 = scmp.lt.s32.totalorder %s19, 1
        %s224 = scalar_select %p223, %s19, 1
        %s225 = smul.addr %s224, 2
        %s226 = smul.addr %s225, 8
        %s227 = scalar_lea.vmem %s1, %s226
        %p228 = pneg %p66
        %p229 = pneg %p63
        %p230 = scmp.lt.s32.totalorder %s19, 1
        %s231 = scalar_select %p230, %s19, 1
        %s232 = smul.addr %s231, 2
        %s233 = smul.addr %s232, 8
        %s234 = scalar_lea.vmem %s2, %s233
        %p235 = pneg %p92
        %p236 = pneg %p89
        %p237 = pneg %p113
        %p238 = pneg %p110
        %p239 = pneg %p134
        %p240 = pneg %p131
        %p241 = pneg %p160
        %p242 = pneg %p157
        %s243 = sand.u32 %s147, 1
        %s244 = scalar_lea.sflag [#allocation3], %s243
        %s245 = sand.u32 %s147, 1
        %s246 = smul.addr %s245, 64
        %s247 = scalar_lea.vmem [#allocation2], %s246
        %p248 = scmp.lt.s32.totalorder %s19, 1
        %s249 = scalar_select %p248, %s19, 1
        %s250 = smul.addr %s249, 8
        %s251 = smul.addr %s250, 8
        %s252 = scalar_lea.vmem %s0, %s251
        %p253 = scmp.lt.s32.totalorder %s19, 1
        %s254 = scalar_select %p253, %s19, 1
        %s255 = smul.addr %s254, 2
        %s256 = smul.addr %s255, 8
        %s257 = scalar_lea.vmem %s1, %s256
        %p258 = scmp.lt.s32.totalorder %s19, 1
        %s259 = scalar_select %p258, %s19, 1
        %s260 = smul.addr %s259, 2
        %s261 = smul.addr %s260, 8
        %s262 = scalar_lea.vmem %s2, %s261
        %v263 = vld [vmem:[%s252] sm:$0xff]
        %v264 = vld [vmem:[%s252 + $0x8] sm:$0xff]
        %v265 = vld [vmem:[%s252 + $0x10] sm:$0xff]
        %v266 = vld [vmem:[%s252 + $0x18] sm:$0xff]
        %v267 = vld [vmem:[%s252 + $0x20] sm:$0xff]
        %v268 = vld [vmem:[%s252 + $0x28] sm:$0xff]
        %v269 = vld [vmem:[%s252 + $0x30] sm:$0xff]
        %v270 = vld [vmem:[%s252 + $0x38] sm:$0xff]
        %v271 = vld [vmem:[%s257] sm:$0xff]
        %v272 = vld [vmem:[%s257 + $0x8] sm:$0xff]
        %v273 = vld [vmem:[%s262] sm:$0xff]
        %v274 = vld [vmem:[%s262 + $0x8] sm:$0x3]
        %vm275 = vcmask 130048
        %v277 = vsel %vm275, %v263, 0
        %v280 = vsel %vm275, %v264, 0
        %282 = vmatpush.msra.mxu0 0.0
        %283 = vmatpush.msra.mxu0 0.0
        %284 = vmatpush.msra.mxu0 0.0
        %285 = vmatpush.msra.mxu0 0.0
        %286 = vmatpush.msra.mxu0 0.0
        %287 = vmatpush.msra.mxu0 0.0
        %288 = vmatpush.msra.mxu0 0.0
        %289 = vmatpush.msra.mxu0 0.0
        %290 = vmatpush.msra.mxu0 0.0
        %291 = vmatpush.msra.mxu0 0.0
        %292 = vmatpush.msra.mxu0 0.0
        %293 = vmatpush.msra.mxu0 0.0
        %294 = vmatpush.msra.mxu0 0.0
        %295 = vmatpush.msra.mxu0 0.0
        %296 = vmatpush.msra.mxu0 %v272
        %297 = vmatpush.msra.mxu0 %v271
        %298 = vmatmul.f32.gmra.mxu0 %v277
        %v299 = vpop.f32.mrf.mxu0
        %v300 = vadd.f32 0.0, %v299
        %301 = vmatmul.f32.gmra.mxu0 %v280
        %v302 = vpop.f32.mrf.mxu0
        %v303 = vadd.f32 0.0, %v302
        %304 = vdwg.mxu0
        %v305 = vld [vmem:[%s3] sm:$0xff]
        %v306 = vld [vmem:[%s3 + $0x8] sm:$0x3]
        %v308 = vsel %vm275, %v273, 0
        %v311 = vsel %vm275, %v274, 0
        %313 = vmatpush.msra.mxu0 0.0
        %314 = vmatpush.msra.mxu0 0.0
        %315 = vmatpush.msra.mxu0 0.0
        %316 = vmatpush.msra.mxu0 0.0
        %317 = vmatpush.msra.mxu0 0.0
        %318 = vmatpush.msra.mxu0 0.0
        %319 = vmatpush.msra.mxu0 0.0
        %320 = vmatpush.msra.mxu0 0.0
        %321 = vmatpush.msra.mxu0 0.0
        %322 = vmatpush.msra.mxu0 0.0
        %323 = vmatpush.msra.mxu0 0.0
        %324 = vmatpush.msra.mxu0 0.0
        %325 = vmatpush.msra.mxu0 0.0
        %326 = vmatpush.msra.mxu0 0.0
        %327 = vmatpush.msra.mxu0 %v264
        %328 = vmatpush.msra.mxu0 %v263
        %329 = vmatmul.f32.gmra.mxu0 %v308
        %v330 = vpop.f32.mrf.mxu0
        %v331 = vadd.f32 0.0, %v330
        %332 = vmatmul.f32.gmra.mxu0 %v311
        %v333 = vpop.f32.mrf.mxu0
        %v334 = vadd.f32 0.0, %v333
        %335 = vdwg.mxu0
        %v336 = vld [vmem:[%s4] sm:$0xff]
        %v337 = vld [vmem:[%s4 + $0x8] sm:$0xff]
        %v338 = vld [vmem:[%s4 + $0x10] sm:$0xff]
        %v339 = vld [vmem:[%s4 + $0x18] sm:$0xff]
        %v340 = vld [vmem:[%s4 + $0x20] sm:$0xff]
        %v341 = vld [vmem:[%s4 + $0x28] sm:$0xff]
        %v342 = vld [vmem:[%s4 + $0x30] sm:$0xff]
        %v343 = vld [vmem:[%s4 + $0x38] sm:$0xff]
        %v345 = vsel %vm275, %v265, 0
        %v348 = vsel %vm275, %v266, 0
        %350 = vmatpush.msra.mxu0 0.0
        %351 = vmatpush.msra.mxu0 0.0
        %352 = vmatpush.msra.mxu0 0.0
        %353 = vmatpush.msra.mxu0 0.0
        %354 = vmatpush.msra.mxu0 0.0
        %355 = vmatpush.msra.mxu0 0.0
        %356 = vmatpush.msra.mxu0 0.0
        %357 = vmatpush.msra.mxu0 0.0
        %358 = vmatpush.msra.mxu0 0.0
        %359 = vmatpush.msra.mxu0 0.0
        %360 = vmatpush.msra.mxu0 0.0
        %361 = vmatpush.msra.mxu0 0.0
        %362 = vmatpush.msra.mxu0 0.0
        %363 = vmatpush.msra.mxu0 0.0
        %364 = vmatpush.msra.mxu0 %v272
        %365 = vmatpush.msra.mxu0 %v271
        %366 = vmatmul.f32.gmra.mxu0 %v345
        %v367 = vpop.f32.mrf.mxu0
        %v368 = vadd.f32 0.0, %v367
        %369 = vmatmul.f32.gmra.mxu0 %v348
        %v370 = vpop.f32.mrf.mxu0
        %v371 = vadd.f32 0.0, %v370
        %372 = vdwg.mxu0
        %s373 = scalar_lea.vmem %s3, 16
        %v374 = vld [vmem:[%s373] sm:$0xff]
        %v375 = vld [vmem:[%s373 + $0x8] sm:$0x3]
        %vm376 = vcmask 80896
        %v378 = vsel %vm376, %v368, 0
        %v381 = vsel %vm376, %v371, 0
        %vm383 = vcmask 1041408
        %v385 = vsel %vm383, %v375, 0
        %387 = vmatpush.msra.mxu0 0.0
        %388 = vmatpush.msra.mxu0 0.0
        %389 = vmatpush.msra.mxu0 0.0
        %390 = vmatpush.msra.mxu0 0.0
        %391 = vmatpush.msra.mxu0 0.0
        %392 = vmatpush.msra.mxu0 0.0
        %393 = vmatpush.msra.mxu0 0.0
        %394 = vmatpush.msra.mxu0 0.0
        %395 = vmatpush.msra.mxu0 0.0
        %396 = vmatpush.msra.mxu0 0.0
        %397 = vmatpush.msra.mxu0 0.0
        %398 = vmatpush.msra.mxu0 0.0
        %399 = vmatpush.msra.mxu0 0.0
        %400 = vmatpush.msra.mxu0 0.0
        %401 = vmatpush.msra.mxu0 %v385
        %402 = vmatpush.msra.mxu0 %v374
        %403 = vmatmul.f32.gmra.mxu0 %v378
        %v404 = vpop.f32.mrf.mxu0
        %v405 = vadd.f32 0.0, %v404
        %406 = vmatmul.f32.gmra.mxu0 %v381
        %v407 = vpop.f32.mrf.mxu0
        %v408 = vadd.f32 0.0, %v407
        %409 = vdwg.mxu0
        %v411 = vsel %vm376, %v300, 0
        %v414 = vsel %vm376, %v303, 0
        %v417 = vsel %vm383, %v306, 0
        %419 = vmatpush.msra.mxu0 0.0
        %420 = vmatpush.msra.mxu0 0.0
        %421 = vmatpush.msra.mxu0 0.0
        %422 = vmatpush.msra.mxu0 0.0
        %423 = vmatpush.msra.mxu0 0.0
        %424 = vmatpush.msra.mxu0 0.0
        %425 = vmatpush.msra.mxu0 0.0
        %426 = vmatpush.msra.mxu0 0.0
        %427 = vmatpush.msra.mxu0 0.0
        %428 = vmatpush.msra.mxu0 0.0
        %429 = vmatpush.msra.mxu0 0.0
        %430 = vmatpush.msra.mxu0 0.0
        %431 = vmatpush.msra.mxu0 0.0
        %432 = vmatpush.msra.mxu0 0.0
        %433 = vmatpush.msra.mxu0 %v417
        %434 = vmatpush.msra.mxu0 %v305
        %435 = vmatmul.f32.gmra.mxu0 %v411
        %v436 = vpop.f32.mrf.mxu0
        %v437 = vadd.f32 %v405, %v436
        %438 = vmatmul.f32.gmra.mxu0 %v414
        %v439 = vpop.f32.mrf.mxu0
        %v440 = vadd.f32 %v408, %v439
        %441 = vdwg.mxu0
        %442 = vmatpush.msra.mxu0 0.0
        %443 = vmatpush.msra.mxu0 0.0
        %444 = vmatpush.msra.mxu0 0.0
        %445 = vmatpush.msra.mxu0 0.0
        %446 = vmatpush.msra.mxu0 0.0
        %447 = vmatpush.msra.mxu0 0.0
        %448 = vmatpush.msra.mxu0 0.0
        %449 = vmatpush.msra.mxu0 0.0
        %450 = vmatpush.msra.mxu0 0.0
        %451 = vmatpush.msra.mxu0 0.0
        %452 = vmatpush.msra.mxu0 0.0
        %453 = vmatpush.msra.mxu0 0.0
        %454 = vmatpush.msra.mxu0 0.0
        %455 = vmatpush.msra.mxu0 0.0
        %456 = vmatpush.msra.mxu0 %v266
        %457 = vmatpush.msra.mxu0 %v265
        %458 = vmatmul.f32.gmra.mxu0 %v308
        %v459 = vpop.f32.mrf.mxu0
        %v460 = vadd.f32 0.0, %v459
        %461 = vmatmul.f32.gmra.mxu0 %v311
        %v462 = vpop.f32.mrf.mxu0
        %v463 = vadd.f32 0.0, %v462
        %464 = vdwg.mxu0
        %s465 = scalar_lea.vmem %s4, 64
        %v466 = vld [vmem:[%s465] sm:$0xff]
        %v467 = vld [vmem:[%s465 + $0x8] sm:$0xff]
        %v468 = vld [vmem:[%s465 + $0x10] sm:$0xff]
        %v469 = vld [vmem:[%s465 + $0x18] sm:$0xff]
        %v470 = vld [vmem:[%s465 + $0x20] sm:$0xff]
        %v471 = vld [vmem:[%s465 + $0x28] sm:$0xff]
        %v472 = vld [vmem:[%s465 + $0x30] sm:$0xff]
        %v473 = vld [vmem:[%s465 + $0x38] sm:$0xff]
        %v475 = vsel %vm376, %v466, 0
        %v478 = vsel %vm376, %v467, 0
        %v481 = vsel %vm376, %v468, 0
        %v484 = vsel %vm376, %v469, 0
        %v487 = vsel %vm376, %v470, 0
        %v490 = vsel %vm376, %v471, 0
        %v493 = vsel %vm376, %v472, 0
        %v496 = vsel %vm376, %v473, 0
        %v499 = vsel %vm383, %v463, 0
        %501 = vmatpush.msra.mxu0 0.0
        %502 = vmatpush.msra.mxu0 0.0
        %503 = vmatpush.msra.mxu0 0.0
        %504 = vmatpush.msra.mxu0 0.0
        %505 = vmatpush.msra.mxu0 0.0
        %506 = vmatpush.msra.mxu0 0.0
        %507 = vmatpush.msra.mxu0 0.0
        %508 = vmatpush.msra.mxu0 0.0
        %509 = vmatpush.msra.mxu0 0.0
        %510 = vmatpush.msra.mxu0 0.0
        %511 = vmatpush.msra.mxu0 0.0
        %512 = vmatpush.msra.mxu0 0.0
        %513 = vmatpush.msra.mxu0 0.0
        %514 = vmatpush.msra.mxu0 0.0
        %515 = vmatpush.msra.mxu0 %v499
        %516 = vmatpush.msra.mxu0 %v460
        %517 = vmatmul.f32.gmra.mxu0 %v475
        %v518 = vpop.f32.mrf.mxu0
        %v519 = vadd.f32 0.0, %v518
        %520 = vmatmul.f32.gmra.mxu0 %v478
        %v521 = vpop.f32.mrf.mxu0
        %v522 = vadd.f32 0.0, %v521
        %523 = vmatmul.f32.gmra.mxu0 %v481
        %v524 = vpop.f32.mrf.mxu0
        %v525 = vadd.f32 0.0, %v524
        %526 = vmatmul.f32.gmra.mxu0 %v484
        %v527 = vpop.f32.mrf.mxu0
        %v528 = vadd.f32 0.0, %v527
        %529 = vmatmul.f32.gmra.mxu0 %v487
        %v530 = vpop.f32.mrf.mxu0
        %v531 = vadd.f32 0.0, %v530
        %532 = vmatmul.f32.gmra.mxu0 %v490
        %v533 = vpop.f32.mrf.mxu0
        %v534 = vadd.f32 0.0, %v533
        %535 = vmatmul.f32.gmra.mxu0 %v493
        %v536 = vpop.f32.mrf.mxu0
        %v537 = vadd.f32 0.0, %v536
        %538 = vmatmul.f32.gmra.mxu0 %v496
        %v539 = vpop.f32.mrf.mxu0
        %v540 = vadd.f32 0.0, %v539
        %541 = vdwg.mxu0
        %v543 = vsel %vm376, %v336, 0
        %v546 = vsel %vm376, %v337, 0
        %v549 = vsel %vm376, %v338, 0
        %v552 = vsel %vm376, %v339, 0
        %v555 = vsel %vm376, %v340, 0
        %v558 = vsel %vm376, %v341, 0
        %v561 = vsel %vm376, %v342, 0
        %v564 = vsel %vm376, %v343, 0
        %v567 = vsel %vm383, %v334, 0
        %569 = vmatpush.msra.mxu0 0.0
        %570 = vmatpush.msra.mxu0 0.0
        %571 = vmatpush.msra.mxu0 0.0
        %572 = vmatpush.msra.mxu0 0.0
        %573 = vmatpush.msra.mxu0 0.0
        %574 = vmatpush.msra.mxu0 0.0
        %575 = vmatpush.msra.mxu0 0.0
        %576 = vmatpush.msra.mxu0 0.0
        %577 = vmatpush.msra.mxu0 0.0
        %578 = vmatpush.msra.mxu0 0.0
        %579 = vmatpush.msra.mxu0 0.0
        %580 = vmatpush.msra.mxu0 0.0
        %581 = vmatpush.msra.mxu0 0.0
        %582 = vmatpush.msra.mxu0 0.0
        %583 = vmatpush.msra.mxu0 %v567
        %584 = vmatpush.msra.mxu0 %v331
        %585 = vmatmul.f32.gmra.mxu0 %v543
        %v586 = vpop.f32.mrf.mxu0
        %v587 = vadd.f32 %v519, %v586
        %588 = vmatmul.f32.gmra.mxu0 %v546
        %v589 = vpop.f32.mrf.mxu0
        %v590 = vadd.f32 %v522, %v589
        %591 = vmatmul.f32.gmra.mxu0 %v549
        %v592 = vpop.f32.mrf.mxu0
        %v593 = vadd.f32 %v525, %v592
        %594 = vmatmul.f32.gmra.mxu0 %v552
        %v595 = vpop.f32.mrf.mxu0
        %v596 = vadd.f32 %v528, %v595
        %597 = vmatmul.f32.gmra.mxu0 %v555
        %v598 = vpop.f32.mrf.mxu0
        %v599 = vadd.f32 %v531, %v598
        %600 = vmatmul.f32.gmra.mxu0 %v558
        %v601 = vpop.f32.mrf.mxu0
        %v602 = vadd.f32 %v534, %v601
        %603 = vmatmul.f32.gmra.mxu0 %v561
        %v604 = vpop.f32.mrf.mxu0
        %v605 = vadd.f32 %v537, %v604
        %606 = vmatmul.f32.gmra.mxu0 %v564
        %v607 = vpop.f32.mrf.mxu0
        %v608 = vadd.f32 %v540, %v607
        %609 = vdwg.mxu0
        %v611 = vsel %vm275, %v267, 0
        %v614 = vsel %vm275, %v268, 0
        %616 = vmatpush.msra.mxu0 0.0
        %617 = vmatpush.msra.mxu0 0.0
        %618 = vmatpush.msra.mxu0 0.0
        %619 = vmatpush.msra.mxu0 0.0
        %620 = vmatpush.msra.mxu0 0.0
        %621 = vmatpush.msra.mxu0 0.0
        %622 = vmatpush.msra.mxu0 0.0
        %623 = vmatpush.msra.mxu0 0.0
        %624 = vmatpush.msra.mxu0 0.0
        %625 = vmatpush.msra.mxu0 0.0
        %626 = vmatpush.msra.mxu0 0.0
        %627 = vmatpush.msra.mxu0 0.0
        %628 = vmatpush.msra.mxu0 0.0
        %629 = vmatpush.msra.mxu0 0.0
        %630 = vmatpush.msra.mxu0 %v272
        %631 = vmatpush.msra.mxu0 %v271
        %632 = vmatmul.f32.gmra.mxu0 %v611
        %v633 = vpop.f32.mrf.mxu0
        %v634 = vadd.f32 0.0, %v633
        %635 = vmatmul.f32.gmra.mxu0 %v614
        %v636 = vpop.f32.mrf.mxu0
        %v637 = vadd.f32 0.0, %v636
        %638 = vdwg.mxu0
        %s639 = scalar_lea.vmem %s3, 32
        %v640 = vld [vmem:[%s639] sm:$0xff]
        %v641 = vld [vmem:[%s639 + $0x8] sm:$0x3]
        %v643 = vsel %vm376, %v634, 0
        %v646 = vsel %vm376, %v637, 0
        %v649 = vsel %vm383, %v641, 0
        %651 = vmatpush.msra.mxu0 0.0
        %652 = vmatpush.msra.mxu0 0.0
        %653 = vmatpush.msra.mxu0 0.0
        %654 = vmatpush.msra.mxu0 0.0
        %655 = vmatpush.msra.mxu0 0.0
        %656 = vmatpush.msra.mxu0 0.0
        %657 = vmatpush.msra.mxu0 0.0
        %658 = vmatpush.msra.mxu0 0.0
        %659 = vmatpush.msra.mxu0 0.0
        %660 = vmatpush.msra.mxu0 0.0
        %661 = vmatpush.msra.mxu0 0.0
        %662 = vmatpush.msra.mxu0 0.0
        %663 = vmatpush.msra.mxu0 0.0
        %664 = vmatpush.msra.mxu0 0.0
        %665 = vmatpush.msra.mxu0 %v649
        %666 = vmatpush.msra.mxu0 %v640
        %667 = vmatmul.f32.gmra.mxu0 %v643
        %v668 = vpop.f32.mrf.mxu0
        %v669 = vadd.f32 0.0, %v668
        %670 = vmatmul.f32.gmra.mxu0 %v646
        %v671 = vpop.f32.mrf.mxu0
        %v672 = vadd.f32 0.0, %v671
        %673 = vdwg.mxu0
        %v674 = vadd.f32 %v437, %v669
        %v675 = vadd.f32 %v440, %v672
        %676 = vmatpush.msra.mxu0 0.0
        %677 = vmatpush.msra.mxu0 0.0
        %678 = vmatpush.msra.mxu0 0.0
        %679 = vmatpush.msra.mxu0 0.0
        %680 = vmatpush.msra.mxu0 0.0
        %681 = vmatpush.msra.mxu0 0.0
        %682 = vmatpush.msra.mxu0 0.0
        %683 = vmatpush.msra.mxu0 0.0
        %684 = vmatpush.msra.mxu0 0.0
        %685 = vmatpush.msra.mxu0 0.0
        %686 = vmatpush.msra.mxu0 0.0
        %687 = vmatpush.msra.mxu0 0.0
        %688 = vmatpush.msra.mxu0 0.0
        %689 = vmatpush.msra.mxu0 0.0
        %690 = vmatpush.msra.mxu0 %v268
        %691 = vmatpush.msra.mxu0 %v267
        %692 = vmatmul.f32.gmra.mxu0 %v308
        %v693 = vpop.f32.mrf.mxu0
        %v694 = vadd.f32 0.0, %v693
        %695 = vmatmul.f32.gmra.mxu0 %v311
        %v696 = vpop.f32.mrf.mxu0
        %v697 = vadd.f32 0.0, %v696
        %698 = vdwg.mxu0
        %s699 = scalar_lea.vmem %s4, 128
        %v700 = vld [vmem:[%s699] sm:$0xff]
        %v701 = vld [vmem:[%s699 + $0x8] sm:$0xff]
        %v702 = vld [vmem:[%s699 + $0x10] sm:$0xff]
        %v703 = vld [vmem:[%s699 + $0x18] sm:$0xff]
        %v704 = vld [vmem:[%s699 + $0x20] sm:$0xff]
        %v705 = vld [vmem:[%s699 + $0x28] sm:$0xff]
        %v706 = vld [vmem:[%s699 + $0x30] sm:$0xff]
        %v707 = vld [vmem:[%s699 + $0x38] sm:$0xff]
        %v709 = vsel %vm376, %v700, 0
        %v712 = vsel %vm376, %v701, 0
        %v715 = vsel %vm376, %v702, 0
        %v718 = vsel %vm376, %v703, 0
        %v721 = vsel %vm376, %v704, 0
        %v724 = vsel %vm376, %v705, 0
        %v727 = vsel %vm376, %v706, 0
        %v730 = vsel %vm376, %v707, 0
        %v733 = vsel %vm383, %v697, 0
        %735 = vmatpush.msra.mxu0 0.0
        %736 = vmatpush.msra.mxu0 0.0
        %737 = vmatpush.msra.mxu0 0.0
        %738 = vmatpush.msra.mxu0 0.0
        %739 = vmatpush.msra.mxu0 0.0
        %740 = vmatpush.msra.mxu0 0.0
        %741 = vmatpush.msra.mxu0 0.0
        %742 = vmatpush.msra.mxu0 0.0
        %743 = vmatpush.msra.mxu0 0.0
        %744 = vmatpush.msra.mxu0 0.0
        %745 = vmatpush.msra.mxu0 0.0
        %746 = vmatpush.msra.mxu0 0.0
        %747 = vmatpush.msra.mxu0 0.0
        %748 = vmatpush.msra.mxu0 0.0
        %749 = vmatpush.msra.mxu0 %v733
        %750 = vmatpush.msra.mxu0 %v694
        %751 = vmatmul.f32.gmra.mxu0 %v709
        %v752 = vpop.f32.mrf.mxu0
        %v753 = vadd.f32 0.0, %v752
        %754 = vmatmul.f32.gmra.mxu0 %v712
        %v755 = vpop.f32.mrf.mxu0
        %v756 = vadd.f32 0.0, %v755
        %757 = vmatmul.f32.gmra.mxu0 %v715
        %v758 = vpop.f32.mrf.mxu0
        %v759 = vadd.f32 0.0, %v758
        %760 = vmatmul.f32.gmra.mxu0 %v718
        %v761 = vpop.f32.mrf.mxu0
        %v762 = vadd.f32 0.0, %v761
        %763 = vmatmul.f32.gmra.mxu0 %v721
        %v764 = vpop.f32.mrf.mxu0
        %v765 = vadd.f32 0.0, %v764
        %766 = vmatmul.f32.gmra.mxu0 %v724
        %v767 = vpop.f32.mrf.mxu0
        %v768 = vadd.f32 0.0, %v767
        %769 = vmatmul.f32.gmra.mxu0 %v727
        %v770 = vpop.f32.mrf.mxu0
        %v771 = vadd.f32 0.0, %v770
        %772 = vmatmul.f32.gmra.mxu0 %v730
        %v773 = vpop.f32.mrf.mxu0
        %v774 = vadd.f32 0.0, %v773
        %775 = vdwg.mxu0
        %v776 = vadd.f32 %v587, %v753
        %v777 = vadd.f32 %v590, %v756
        %v778 = vadd.f32 %v593, %v759
        %v779 = vadd.f32 %v596, %v762
        %v780 = vadd.f32 %v599, %v765
        %v781 = vadd.f32 %v602, %v768
        %v782 = vadd.f32 %v605, %v771
        %v783 = vadd.f32 %v608, %v774
        %v785 = vsel %vm275, %v269, 0
        %v788 = vsel %vm275, %v270, 0
        %790 = vmatpush.msra.mxu0 0.0
        %791 = vmatpush.msra.mxu0 0.0
        %792 = vmatpush.msra.mxu0 0.0
        %793 = vmatpush.msra.mxu0 0.0
        %794 = vmatpush.msra.mxu0 0.0
        %795 = vmatpush.msra.mxu0 0.0
        %796 = vmatpush.msra.mxu0 0.0
        %797 = vmatpush.msra.mxu0 0.0
        %798 = vmatpush.msra.mxu0 0.0
        %799 = vmatpush.msra.mxu0 0.0
        %800 = vmatpush.msra.mxu0 0.0
        %801 = vmatpush.msra.mxu0 0.0
        %802 = vmatpush.msra.mxu0 0.0
        %803 = vmatpush.msra.mxu0 0.0
        %804 = vmatpush.msra.mxu0 %v272
        %805 = vmatpush.msra.mxu0 %v271
        %806 = vmatmul.f32.gmra.mxu0 %v785
        %v807 = vpop.f32.mrf.mxu0
        %v808 = vadd.f32 0.0, %v807
        %809 = vmatmul.f32.gmra.mxu0 %v788
        %v810 = vpop.f32.mrf.mxu0
        %v811 = vadd.f32 0.0, %v810
        %812 = vdwg.mxu0
        %s813 = scalar_lea.vmem %s3, 48
        %v814 = vld [vmem:[%s813] sm:$0xff]
        %v815 = vld [vmem:[%s813 + $0x8] sm:$0x3]
        %v817 = vsel %vm376, %v808, 0
        %v820 = vsel %vm376, %v811, 0
        %v823 = vsel %vm383, %v815, 0
        %825 = vmatpush.msra.mxu0 0.0
        %826 = vmatpush.msra.mxu0 0.0
        %827 = vmatpush.msra.mxu0 0.0
        %828 = vmatpush.msra.mxu0 0.0
        %829 = vmatpush.msra.mxu0 0.0
        %830 = vmatpush.msra.mxu0 0.0
        %831 = vmatpush.msra.mxu0 0.0
        %832 = vmatpush.msra.mxu0 0.0
        %833 = vmatpush.msra.mxu0 0.0
        %834 = vmatpush.msra.mxu0 0.0
        %835 = vmatpush.msra.mxu0 0.0
        %836 = vmatpush.msra.mxu0 0.0
        %837 = vmatpush.msra.mxu0 0.0
        %838 = vmatpush.msra.mxu0 0.0
        %839 = vmatpush.msra.mxu0 %v823
        %840 = vmatpush.msra.mxu0 %v814
        %841 = vmatmul.f32.gmra.mxu0 %v817
        %v842 = vpop.f32.mrf.mxu0
        %v843 = vadd.f32 0.0, %v842
        %844 = vmatmul.f32.gmra.mxu0 %v820
        %v845 = vpop.f32.mrf.mxu0
        %v846 = vadd.f32 0.0, %v845
        %847 = vdwg.mxu0
        %v848 = vadd.f32 %v674, %v843
        %v849 = vadd.f32 %v675, %v846
        %850 = vmatpush.msra.mxu0 0.0
        %851 = vmatpush.msra.mxu0 0.0
        %852 = vmatpush.msra.mxu0 0.0
        %853 = vmatpush.msra.mxu0 0.0
        %854 = vmatpush.msra.mxu0 0.0
        %855 = vmatpush.msra.mxu0 0.0
        %856 = vmatpush.msra.mxu0 0.0
        %857 = vmatpush.msra.mxu0 0.0
        %858 = vmatpush.msra.mxu0 0.0
        %859 = vmatpush.msra.mxu0 0.0
        %860 = vmatpush.msra.mxu0 0.0
        %861 = vmatpush.msra.mxu0 0.0
        %862 = vmatpush.msra.mxu0 0.0
        %863 = vmatpush.msra.mxu0 0.0
        %864 = vmatpush.msra.mxu0 %v270
        %865 = vmatpush.msra.mxu0 %v269
        %866 = vmatmul.f32.gmra.mxu0 %v308
        %v867 = vpop.f32.mrf.mxu0
        %v868 = vadd.f32 0.0, %v867
        %869 = vmatmul.f32.gmra.mxu0 %v311
        %v870 = vpop.f32.mrf.mxu0
        %v871 = vadd.f32 0.0, %v870
        %872 = vdwg.mxu0
        %s873 = scalar_lea.vmem %s4, 192
        %v874 = vld [vmem:[%s873] sm:$0xff]
        %v875 = vld [vmem:[%s873 + $0x8] sm:$0xff]
        %v876 = vld [vmem:[%s873 + $0x10] sm:$0xff]
        %v877 = vld [vmem:[%s873 + $0x18] sm:$0xff]
        %v878 = vld [vmem:[%s873 + $0x20] sm:$0xff]
        %v879 = vld [vmem:[%s873 + $0x28] sm:$0xff]
        %v880 = vld [vmem:[%s873 + $0x30] sm:$0xff]
        %v881 = vld [vmem:[%s873 + $0x38] sm:$0xff]
        %v883 = vsel %vm376, %v874, 0
        %v886 = vsel %vm376, %v875, 0
        %v889 = vsel %vm376, %v876, 0
        %v892 = vsel %vm376, %v877, 0
        %v895 = vsel %vm376, %v878, 0
        %v898 = vsel %vm376, %v879, 0
        %v901 = vsel %vm376, %v880, 0
        %v904 = vsel %vm376, %v881, 0
        %v907 = vsel %vm383, %v871, 0
        %909 = vmatpush.msra.mxu0 0.0
        %910 = vmatpush.msra.mxu0 0.0
        %911 = vmatpush.msra.mxu0 0.0
        %912 = vmatpush.msra.mxu0 0.0
        %913 = vmatpush.msra.mxu0 0.0
        %914 = vmatpush.msra.mxu0 0.0
        %915 = vmatpush.msra.mxu0 0.0
        %916 = vmatpush.msra.mxu0 0.0
        %917 = vmatpush.msra.mxu0 0.0
        %918 = vmatpush.msra.mxu0 0.0
        %919 = vmatpush.msra.mxu0 0.0
        %920 = vmatpush.msra.mxu0 0.0
        %921 = vmatpush.msra.mxu0 0.0
        %922 = vmatpush.msra.mxu0 0.0
        %923 = vmatpush.msra.mxu0 %v907
        %924 = vmatpush.msra.mxu0 %v868
        %925 = vmatmul.f32.gmra.mxu0 %v883
        %v926 = vpop.f32.mrf.mxu0
        %v927 = vadd.f32 0.0, %v926
        %928 = vmatmul.f32.gmra.mxu0 %v886
        %v929 = vpop.f32.mrf.mxu0
        %v930 = vadd.f32 0.0, %v929
        %931 = vmatmul.f32.gmra.mxu0 %v889
        %v932 = vpop.f32.mrf.mxu0
        %v933 = vadd.f32 0.0, %v932
        %934 = vmatmul.f32.gmra.mxu0 %v892
        %v935 = vpop.f32.mrf.mxu0
        %v936 = vadd.f32 0.0, %v935
        %937 = vmatmul.f32.gmra.mxu0 %v895
        %v938 = vpop.f32.mrf.mxu0
        %v939 = vadd.f32 0.0, %v938
        %940 = vmatmul.f32.gmra.mxu0 %v898
        %v941 = vpop.f32.mrf.mxu0
        %v942 = vadd.f32 0.0, %v941
        %943 = vmatmul.f32.gmra.mxu0 %v901
        %v944 = vpop.f32.mrf.mxu0
        %v945 = vadd.f32 0.0, %v944
        %946 = vmatmul.f32.gmra.mxu0 %v904
        %v947 = vpop.f32.mrf.mxu0
        %v948 = vadd.f32 0.0, %v947
        %949 = vdwg.mxu0
        %v950 = vadd.f32 %v776, %v927
        %v951 = vadd.f32 %v777, %v930
        %v952 = vadd.f32 %v778, %v933
        %v953 = vadd.f32 %v779, %v936
        %v954 = vadd.f32 %v780, %v939
        %v955 = vadd.f32 %v781, %v942
        %v956 = vadd.f32 %v782, %v945
        %v957 = vadd.f32 %v783, %v948
        %v958 = vadd.f32 %v950, %v848
        %v959 = vadd.f32 %v951, %v849
        %960 = vst.msk [vmem:[%s247] sm:$0xff] %vm275, %v958
        %961 = vst.msk [vmem:[%s247 + $0x8] sm:$0xff] %vm275, %v959
        %964 = vrot.lane.b32.xlu0 %v848, 112
        %v965 = vpop.permute.xlu0 %964
        %966 = vrot.lane.b32.xlu0 %v849, 112
        %v967 = vpop.permute.xlu0 %966
        %v970 = vadd.f32 %v952, %v965
        %v971 = vadd.f32 %v953, %v967
        %s972 = scalar_lea.vmem %s247, 16 [#allocation2]
        %973 = vst.msk [vmem:[%s972] sm:$0xff] %vm275, %v970
        %974 = vst.msk [vmem:[%s972 + $0x8] sm:$0xff] %vm275, %v971
        %975 = vrot.lane.b32.xlu0 %v848, 96
        %v976 = vpop.permute.xlu0 %975
        %977 = vrot.lane.b32.xlu0 %v849, 96
        %v978 = vpop.permute.xlu0 %977
        %v981 = vadd.f32 %v954, %v976
        %v982 = vadd.f32 %v955, %v978
        %s983 = scalar_lea.vmem %s247, 32 [#allocation2]
        %984 = vst.msk [vmem:[%s983] sm:$0xff] %vm275, %v981
        %985 = vst.msk [vmem:[%s983 + $0x8] sm:$0xff] %vm275, %v982
        %986 = vrot.lane.b32.xlu0 %v848, 80
        %v987 = vpop.permute.xlu0 %986
        %988 = vrot.lane.b32.xlu0 %v849, 80
        %v989 = vpop.permute.xlu0 %988
        %v992 = vadd.f32 %v956, %v987
        %v993 = vadd.f32 %v957, %v989
        %s994 = scalar_lea.vmem %s247, 48 [#allocation2]
        %995 = vst.msk [vmem:[%s994] sm:$0xff] %vm275, %v992
        %996 = vst.msk [vmem:[%s994 + $0x8] sm:$0xff] %vm275, %v993
        %s997 = sand.u32 %s147, 1
        %s998 = scalar_lea.sflag [#allocation3], %s997
        %s999 = sand.u32 %s147, 1
        %s1000 = smul.addr %s999, 64
        %s1001 = scalar_lea.vmem [#allocation2], %s1000
        // Predicated region
        $region41: #{tpu_custom_call.1} parent=39 // pred_check
          %p1002 = pneg %p157
        $region42: #{tpu_custom_call.1} parent=39 // pred_check_branch
          %1004 = sbr.rel (%p1002) target = $region44
        $region43: #{tpu_custom_call.1} parent=39 // pred_region
          %1006 = vsyncadd %s998, 0
          %s1007 = smul.addr %s19, 8
          %s1008 = smul.addr %s1007, 8
          %s1009 = scalar_lea.hbm %s5, %s1008
          %s1010 = sshll.u32 %s1001, 4
          %s1011 = int_to_ptr.vmem [resolvable:$true] %s1010
          %s1012 = sshll.u32 %s1009, 4
          %s1013 = int_to_ptr.hbm [resolvable:$true] %s1012
          %1018 = dma.vmem_to_hbm [thread:$0]  %s1011, 1024, %s1013, %s998, 128, 128, 8
        $region44: #{tpu_custom_call.1} parent=39 // pred_fallthru
          _
      $region40: #{tpu_custom_call.1} parent=5 // pred_fallthru
        _
      %p1019 = scmp.le.s32.totalorder 2, %s14
      // Predicated region
      $region45: #{tpu_custom_call.1} parent=5 // pred_check
        %p1020 = pneg %p1019
      $region46: #{tpu_custom_call.1} parent=5 // pred_check_branch
        %1022 = sbr.rel (%p1020) target = $region48
      $region47: #{tpu_custom_call.1} parent=5 // pred_region
        %s1023 = ssub.s32 %s14, 2
        // Predicated region
        $region49: #{tpu_custom_call.1} parent=47 // pred_check
          %p1024 = pneg %p163
        $region50: #{tpu_custom_call.1} parent=47 // pred_check_branch
          %1026 = sbr.rel (%p1024) target = $region52
        $region51: #{tpu_custom_call.1} parent=47 // pred_region
          %s1027 = sand.u32 %s148, 1
          %s1028 = scalar_lea.sflag [#allocation3], %s1027
          %s1029 = sand.u32 %s148, 1
          %s1030 = smul.addr %s1029, 64
          %s1031 = scalar_lea.vmem [#allocation2], %s1030
          %1033 = dma.done %s1028, 1024
        $region52: #{tpu_custom_call.1} parent=47 // pred_fallthru
          _
      $region48: #{tpu_custom_call.1} parent=5 // pred_fallthru
        _
    $region6: #{tpu_custom_call.1} parent=1 // loop_footer
      %s18 = sadd.s32 1, %s14
    $region7: #{tpu_custom_call.1} parent=1 // loop_footer_branch
      %13 = sbr.rel target = $region3
    $region8: #{tpu_custom_call.1} parent=1 // loop_exit
      _
    %1034 = vsyncpa [#allocation3], 1
    %s1035 = scalar_lea.sflag [#allocation3], 1
    %1036 = vsyncpa %s1035, 1

</llo_original>
